<compile_context>
chip_gen: v7x
topology: tpu7x:2x2x1
jax: 0.10.0
libtpu: 0.0.40
codegen_flags: <defaults>
</compile_context>

<pallas_src>
import functools

import jax
import jax.numpy as jnp
from jax.experimental import pallas as pl
from jax.experimental.pallas import tpu as pltpu

PAD = 0  # Constants.PAD


def _cal_correct_kernel(pred_ref, gold_ref, out_ref, *, n_tokens):
    # pred_ref: (TM, V) logits tile (native dtype)
    # gold_ref: (TM, 1) int32 labels tile
    # out_ref:  (1, 1)  int32 partial count (SMEM, one per grid step)
    pred = pred_ref[...].astype(jnp.float32)  # in-register cast (v5e has no bf16 VALU)
    gold = gold_ref[...]
    tm, V = pred.shape

    # argmax over the last (lane) axis, first-occurrence tie-break
    # (matches jnp.argmax / torch.argmax semantics).
    maxv = jnp.max(pred, axis=-1, keepdims=True)                      # (TM, 1)
    idx = jax.lax.broadcasted_iota(jnp.int32, pred.shape, 1)          # (TM, V)
    am = jnp.min(jnp.where(pred == maxv, idx, jnp.int32(V)),
                 axis=-1, keepdims=True)                              # (TM, 1)

    # Row-validity mask for the ragged last tile (no wrapper-side padding).
    row = jax.lax.broadcasted_iota(jnp.int32, (tm, 1), 0)
    valid = (pl.program_id(0) * tm + row) < n_tokens

    correct = (am == gold) & (gold != jnp.int32(PAD)) & valid
    out_ref[0, 0] = jnp.sum(correct.astype(jnp.int32))


def cal_correct_pallas(pred, gold, *, vmem_tile_budget_bytes=12 * 1024 * 1024):
    """pred: (B, S, V) float logits; gold: (B, S) int labels. Returns int32 count."""
    B, S, V = pred.shape
    N = B * S
    pred2 = pred.reshape(N, V)                    # contiguous reshape: no HBM copy
    gold2 = gold.reshape(N, 1).astype(jnp.int32)  # tiny (N * 4 bytes)

    itemsize = jnp.dtype(pred2.dtype).itemsize
    # Sublane alignment accounting for sub-32-bit packing (f32:8, bf16:16, int8:32).
    row_align = 8 * max(1, 4 // itemsize)
    # Largest token tile whose double-buffered logit tile fits the VMEM budget.
    tile_m = vmem_tile_budget_bytes // (2 * V * itemsize)
    tile_m = max(row_align, min(1024, (tile_m // row_align) * row_align))
    tile_m = min(tile_m, pl.cdiv(N, row_align) * row_align)  # never exceed padded N
    n_tiles = pl.cdiv(N, tile_m)

    # TODO(synk): for very large vocabularies (V >~ 16K) add an inner vocab grid
    # axis with running max/argmax scratch so tile_m can stay large on v7x's
    # 64 MiB VMEM; unnecessary at the vocab sizes exercised here.

    cost = pl.CostEstimate(
        flops=2 * N * V,
        transcendentals=0,
        bytes_accessed=N * V * itemsize + N * 4 + n_tiles * 4,
    )

    partials = pl.pallas_call(
        functools.partial(_cal_correct_kernel, n_tokens=N),
        out_shape=jax.ShapeDtypeStruct((n_tiles, 1), jnp.int32),
        grid_spec=pltpu.PrefetchScalarGridSpec(
            num_scalar_prefetch=0,
            grid=(n_tiles,),
            in_specs=[
                pl.BlockSpec((tile_m, V), lambda i: (i, 0)),
                pl.BlockSpec((tile_m, 1), lambda i: (i, 0)),
            ],
            out_specs=pl.BlockSpec((1, 1), lambda i: (i, 0),
                                   memory_space=pltpu.SMEM),
        ),
        compiler_params=pltpu.CompilerParams(
            dimension_semantics=("parallel",),
            vmem_limit_bytes=32 * 1024 * 1024,
        ),
        cost_estimate=cost,
    )(pred2, gold2)
    return jnp.sum(partials).astype(jnp.int32)


class Loss:
    """Pallas port of the `Loss` base class."""

    def __init__(self, opt=None):
        self.opt = opt

    def cal_performance(self, pred, gold):
        loss = self.forward(pred, gold)
        n_correct = cal_correct_pallas(pred, gold)
        return (loss, n_correct)

    def forward(self, pred, gold):
        # TODO(synk): base-class forward raises NotImplementedError in the
        # reference module (abstract); no concrete loss to translate.  When a
        # concrete cross-entropy is added, fuse it with cal_correct so the
        # (N, V) logits are read from HBM only once.
        raise NotImplementedError()


def _ref_correct(pred, gold):
    return jnp.sum(
        jnp.logical_and(jnp.argmax(pred, axis=-1) == gold, gold != PAD)
    ).astype(jnp.int32)


if __name__ == "__main__":
    key = jax.random.PRNGKey(0)
    k1, k2, k3, k4, k5, k6 = jax.random.split(key, 6)

    # Case 1: small, tile-aligned, f32.
    B, S, V = 2, 8, 128
    pred = jax.random.normal(k1, (B, S, V), dtype=jnp.float32)
    gold = jax.random.randint(k2, (B, S), 0, V, dtype=jnp.int32)
    out = jax.block_until_ready(cal_correct_pallas(pred, gold))
    assert int(out) == int(_ref_correct(pred, gold)), (int(out), int(_ref_correct(pred, gold)))

    # Case 2: ragged token count (N = 15), exercises the in-kernel validity mask.
    B2, S2 = 3, 5
    pred2 = jax.random.normal(k3, (B2, S2, V), dtype=jnp.float32)
    gold2 = jax.random.randint(k4, (B2, S2), 0, V, dtype=jnp.int32)
    out2 = jax.block_until_ready(cal_correct_pallas(pred2, gold2))
    assert int(out2) == int(_ref_correct(pred2, gold2)), (int(out2), int(_ref_correct(pred2, gold2)))

    # Case 3: native bf16 logits (no HBM upcast copy).
    pred3 = jax.random.normal(k5, (B, S, V), dtype=jnp.bfloat16)
    gold3 = jax.random.randint(k6, (B, S), 0, V, dtype=jnp.int32)
    out3 = jax.block_until_ready(cal_correct_pallas(pred3, gold3))
    assert int(out3) == int(_ref_correct(pred3, gold3)), (int(out3), int(_ref_correct(pred3, gold3)))

    print("KERNEL_OK")
</pallas_src>

<mosaic_0001>
module attributes {stable_mosaic.version = 11 : i64} {
  func.func @_cal_correct_kernel(%arg0: i32, %arg1: memref<16x128xf32, #tpu.memory_space<vmem>>, %arg2: memref<16x1xi32, #tpu.memory_space<vmem>>, %arg3: memref<1x1xi32, #tpu.memory_space<smem>>) attributes {dimension_semantics = [#tpu.dimension_semantics<parallel>], iteration_bounds = array<i64: 1>, scalar_prefetch = 0 : i64, scratch_operands = 0 : i64, tpu.core_type = #tpu.core_type<tc>, window_params = [{transform_indices = @transform_0, window_bounds = array<i64: 16, 128>}, {transform_indices = @transform_1, window_bounds = array<i64: 16, 1>}, {transform_indices = @transform_2, window_bounds = array<i64: 1, 1>}]} {
    %c0 = arith.constant 0 : index
    %c0_0 = arith.constant 0 : index
    %0 = vector.load %arg1[%c0, %c0_0] : memref<16x128xf32, #tpu.memory_space<vmem>>, vector<16x128xf32>
    %c0_1 = arith.constant 0 : index
    %c0_2 = arith.constant 0 : index
    %1 = vector.load %arg2[%c0_1, %c0_2] : memref<16x1xi32, #tpu.memory_space<vmem>>, vector<16x1xi32>
    %cst = arith.constant dense<0xFF800000> : vector<16xf32>
    %2 = vector.multi_reduction <maximumf>, %0, %cst [1] : vector<16x128xf32> to vector<16xf32>
    %3 = vector.shape_cast %2 : vector<16xf32> to vector<16x1xf32>
    %4 = tpu.iota {dimensions = array<i32: 1>} : vector<16x128xi32>
    %5 = vector.broadcast %3 : vector<16x1xf32> to vector<16x128xf32>
    %6 = arith.cmpf oeq, %0, %5 : vector<16x128xf32>
    %c128_i32 = arith.constant 128 : i32
    %7 = vector.broadcast %c128_i32 : i32 to vector<16x128xi32>
    %8 = arith.select %6, %4, %7 : vector<16x128xi1>, vector<16x128xi32>
    %cst_3 = arith.constant dense<2147483647> : vector<16xi32>
    %9 = vector.multi_reduction <minsi>, %8, %cst_3 [1] : vector<16x128xi32> to vector<16xi32>
    %10 = vector.shape_cast %9 : vector<16xi32> to vector<16x1xi32>
    %11 = tpu.iota {dimensions = array<i32: 0>} : vector<16x1xi32>
    %c16_i32 = arith.constant 16 : i32
    %12 = arith.muli %arg0, %c16_i32 : i32
    %13 = vector.broadcast %12 : i32 to vector<16x1xi32>
    %14 = arith.addi %13, %11 : vector<16x1xi32>
    %c16_i32_4 = arith.constant 16 : i32
    %15 = vector.broadcast %c16_i32_4 : i32 to vector<16x1xi32>
    %16 = arith.cmpi slt, %14, %15 : vector<16x1xi32>
    %17 = arith.cmpi eq, %10, %1 : vector<16x1xi32>
    %c0_i32 = arith.constant 0 : i32
    %18 = vector.broadcast %c0_i32 : i32 to vector<16x1xi32>
    %19 = arith.cmpi ne, %1, %18 : vector<16x1xi32>
    %20 = arith.andi %17, %19 : vector<16x1xi1>
    %21 = arith.andi %20, %16 : vector<16x1xi1>
    %22 = arith.extui %21 : vector<16x1xi1> to vector<16x1xi32>
    %23 = vector.shape_cast %22 : vector<16x1xi32> to vector<1x16x1xi32>
    %cst_5 = arith.constant dense<0> : vector<1xi32>
    %24 = vector.multi_reduction <add>, %23, %cst_5 [1, 2] : vector<1x16x1xi32> to vector<1xi32>
    %25 = vector.shape_cast %24 : vector<1xi32> to vector<1x1x1xi32>
    %26 = vector.extract %25[0, 0, 0] : i32 from vector<1x1x1xi32>
    %c0_6 = arith.constant 0 : index
    %c0_7 = arith.constant 0 : index
    %27 = memref.load %arg3[%c0_6, %c0_7] : memref<1x1xi32, #tpu.memory_space<smem>>
    memref.store %26, %arg3[%c0_6, %c0_7] : memref<1x1xi32, #tpu.memory_space<smem>>
    return
  }
  func.func @transform_0(%arg0: i32) -> (i32, i32) {
    %c0_i32 = arith.constant 0 : i32
    %c0_i32_0 = arith.constant 0 : i32
    return %arg0, %c0_i32 : i32, i32
  }
  func.func @transform_1(%arg0: i32) -> (i32, i32) {
    %c0_i32 = arith.constant 0 : i32
    %c0_i32_0 = arith.constant 0 : i32
    return %arg0, %c0_i32 : i32, i32
  }
  func.func @transform_2(%arg0: i32) -> (i32, i32) {
    %c0_i32 = arith.constant 0 : i32
    %c0_i32_0 = arith.constant 0 : i32
    return %arg0, %c0_i32 : i32, i32
  }
}

</mosaic_0001>

<llo_original>
// kernel: tpu_custom_call.1
$region0: #{tpu_custom_call.1}
  #allocation0 [shape = 'u32[]', space=smem, size = 0x4, offset = 0x4, fixed_abs, tag = 'smem constant byte address 0x4 - core index']
  #allocation1 [shape = 'u32[144,128]{1,0:T(1,128)}', space=vmem, size = 0x12000, scoped, tag = 'internal scratch']
  %s0 = inlined_call_operand.vmem [shape: f32[16,128], index: 0, kind: input, shape index: {}]
  %s1 = inlined_call_operand.vmem [shape: s32[16,1], index: 1, kind: input, shape index: {}]
  %s2 = inlined_call_operand.hbm [shape: s32[1,1], index: 2, kind: output, shape index: {}]
  %s3 = sld [smem:[#allocation0]]
  $region18: #{tpu_custom_call.1} parent=0
    _
  %s5 = ssub.s32 1, %s3
  %s6 = scalar_select 0, %s5, %s3
  $region1: #{tpu_custom_call.1} parent=0
    #allocation2 [shape = 'u8[512]{0}', space=smem, size = 0x200, scoped, tag = 'output window, operand 0, single buffered']
    #allocation3 [shape = 's32[1]{0}', space=sflag, size = 0x4, scoped, tag = 'scoped memory for tpu_custom_call.1']
    %7 = vsyncpa [#allocation3], 0
    // Predicated region
    $region2: #{tpu_custom_call.1} parent=1 // pred_check
      _
    $region3: #{tpu_custom_call.1} parent=1 // pred_check_branch
      %9 = sbr.rel (0) target = $region5
    $region4: #{tpu_custom_call.1} parent=1 // pred_region
      _
    $region5: #{tpu_custom_call.1} parent=1 // pred_fallthru
      _
    // Predicated region
    $region6: #{tpu_custom_call.1} parent=1 // pred_check
      _
    $region7: #{tpu_custom_call.1} parent=1 // pred_check_branch
      %11 = sbr.rel (0) target = $region9
    $region8: #{tpu_custom_call.1} parent=1 // pred_region
      _
    $region9: #{tpu_custom_call.1} parent=1 // pred_fallthru
      _
    %v12 = vld [vmem:[%s0] sm:$0xff]
    %v13 = vld [vmem:[%s0 + $0x8] sm:$0xff]
    %v14 = vld [vmem:[%s1] sm:$0xff]
    %v15 = vld [vmem:[%s1 + $0x8] sm:$0xff]
    %16 = vmax.xlane.f32.xlu0 %v12
    %v17 = vpop.xlane.xlu0 %16
    %18 = vmax.xlane.f32.xlu0 %v13
    %v19 = vpop.xlane.xlu0 %18
    %v20 = vlaneseq
    %v21 = vand.u32 %v20, 127
    %vm22 = vcmp.eq.f32.partialorder %v12, %v17
    %vm23 = vcmp.eq.f32.partialorder %v13, %v19
    %v24 = vsel %vm22, %v21, 128
    %v25 = vsel %vm23, %v21, 128
    %v26 = vand.u32 %v24, 65535
    %v27 = vshra.s32 %v24, 16
    %v28 = vcvt.s32.f32 %v26
    %v29 = vcvt.s32.f32 %v27
    %30 = vmin.xlane.f32.xlu0 %v29
    %v31 = vpop.xlane.xlu0 %30
    %vm32 = vcmp.eq.f32.partialorder %v29, %v31
    %v33 = vsel %vm32, %v28, inf
    %34 = vmin.xlane.f32.xlu0 %v33
    %v35 = vpop.xlane.xlu0 %34
    %v36 = vcvt.f32.s32 %v35
    %v37 = vcvt.f32.s32 %v31
    %v38 = vshll.u32 %v37, 16
    %v39 = vadd.s32 %v38, %v36
    %v40 = vand.u32 %v25, 65535
    %v41 = vshra.s32 %v25, 16
    %v42 = vcvt.s32.f32 %v40
    %v43 = vcvt.s32.f32 %v41
    %44 = vmin.xlane.f32.xlu0 %v43
    %v45 = vpop.xlane.xlu0 %44
    %vm46 = vcmp.eq.f32.partialorder %v43, %v45
    %v47 = vsel %vm46, %v42, inf
    %48 = vmin.xlane.f32.xlu0 %v47
    %v49 = vpop.xlane.xlu0 %48
    %v50 = vcvt.f32.s32 %v49
    %v51 = vcvt.f32.s32 %v45
    %v52 = vshll.u32 %v51, 16
    %v53 = vadd.s32 %v52, %v50
    %v54 = vlaneseq
    %v55 = vshrl.u32 %v54, 7
    %v56 = vadd.s32 %v55, 8
    %s57 = smul.u32 0, 16
    %v58 = vstv %s57
    %v59 = vadd.s32 %v58, %v55
    %v60 = vadd.s32 %v58, %v56
    %vm61 = vcmp.lt.s32.totalorder %v59, 16
    %vm62 = vcmp.lt.s32.totalorder %v60, 16
    %vm63 = vcmp.eq.s32.totalorder %v39, %v14
    %vm64 = vcmp.eq.s32.totalorder %v53, %v15
    %vm65 = vcmp.ne.s32.totalorder %v14, 0
    %vm66 = vcmp.ne.s32.totalorder %v15, 0
    %vm67 = vmand %vm63, %vm65
    %vm68 = vmand %vm64, %vm66
    %vm69 = vmand %vm67, %vm61
    %vm70 = vmand %vm68, %vm62
    %v71 = vsel %vm69, 1, 0
    %v72 = vsel %vm70, 1, 0
    %vm73 = vcmask 7168
    %v74 = vsel %vm73, %v71, 0
    %v75 = vsel %vm73, %v72, 0
    %v76 = vadd.s32 %v74, %v75
    %v77 = vand.u32 %v76, 65535
    %v78 = vshrl.u32 %v76, 16
    %v79 = vcvt.s32.f32 %v77
    %v80 = vcvt.s32.f32 %v78
    %81 = vadd.xlane.f32.xlu0 %v79
    %v82 = vpop.xlane.xlu0 %81
    %83 = vadd.xlane.f32.xlu0 %v80
    %v84 = vpop.xlane.xlu0 %83
    %v85 = vcvt.f32.s32 %v82
    %v86 = vcvt.f32.s32 %v84
    %v87 = vshll.u32 %v86, 16
    %v88 = vadd.s32 %v87, %v85
    %v89 = vrot.slane %v88, 4
    %v90 = vadd.s32 %v88, %v89
    %v91 = vrot.slane %v90, 2
    %v92 = vadd.s32 %v90, %v91
    %v93 = vrot.slane %v92, 1
    %v94 = vadd.s32 %v92, %v93
    %s95 = vtos %v94
    %s96 = scalar_lea.smem [#allocation2], 0
    %97 = sst [smem:[%s96]] %s95
    // Predicated region
    $region10: #{tpu_custom_call.1} parent=1 // pred_check
      _
    $region11: #{tpu_custom_call.1} parent=1 // pred_check_branch
      %99 = sbr.rel (0) target = $region13
    $region12: #{tpu_custom_call.1} parent=1 // pred_region
      %s101 = ssub.s32 16, 16
      %102 = vsyncadd [#allocation3], %s101
      %105 = dma.smem_to_hbm [#allocation2], 16, %s2, [#allocation3]
    $region13: #{tpu_custom_call.1} parent=1 // pred_fallthru
      _
    // Predicated region
    $region14: #{tpu_custom_call.1} parent=1 // pred_check
      _
    $region15: #{tpu_custom_call.1} parent=1 // pred_check_branch
      %107 = sbr.rel (0) target = $region17
    $region16: #{tpu_custom_call.1} parent=1 // pred_region
      %108 = dma.done [#allocation3], 16
    $region17: #{tpu_custom_call.1} parent=1 // pred_fallthru
      _
    %109 = sfence
    %110 = vsyncpa [#allocation3], 1

</llo_original>
